<compile_context>
chip_gen: v7x
topology: tpu7x:2x2x1
jax: 0.10.0
libtpu: 0.0.40
codegen_flags: <defaults>
</compile_context>

<pallas_src>
import math
import functools

import jax
import jax.numpy as jnp
from jax import lax
from jax.experimental import pallas as pl
from jax.experimental.pallas import tpu as pltpu


# ----------------------------------------------------------------------------
# small helpers
# ----------------------------------------------------------------------------
VMEM_LIMIT = 48 * 1024 * 1024        # <= 64 MiB physical VMEM on v7x


def _round_up(x, m):
    return (x + m - 1) // m * m


def lrelu(x):
    return jnp.where(x >= 0, x, 0.1 * x)


def _pick_tiles(M, K):
    """Adaptive M-tile: big tiles for small K (mem-bound encoder), smaller for
    the huge-K decoder/dc layers; always >=2 grid steps when M allows (v7x)."""
    if K <= 512:
        cap = 1024
    elif K <= 2048:
        cap = 512
    else:
        cap = 256
    m8 = _round_up(max(M, 1), 8)
    nt = max(1, -(-m8 // cap))
    if nt == 1 and m8 >= 16:
        nt = 2                      # keep both v7x TensorCores busy
    tm = _round_up(-(-M // nt), 8)
    return tm, tm * nt


# ----------------------------------------------------------------------------
# Pallas kernel 1: bf16 matmul + f32 bias + optional LeakyReLU (all convs)
# ----------------------------------------------------------------------------
def _mm_bias_act_kernel(a_ref, w_ref, b_ref, o_ref, *, leaky):
    acc = jnp.dot(a_ref[...], w_ref[...], preferred_element_type=jnp.float32)
    acc = acc + b_ref[...]
    if leaky:
        acc = jnp.where(acc >= 0, acc, 0.1 * acc)
    o_ref[...] = acc


@functools.partial(jax.jit, static_argnames=("leaky", "n_out"))
def _matmul_bias_act(a, w, b, leaky, n_out):
    """a: (M, K) bf16, w: (K, Np) bf16, b: (1, Np) f32 -> (M, n_out) f32."""
    M, K = a.shape
    Np = w.shape[1]
    a = a.astype(jnp.bfloat16)
    w = w.astype(jnp.bfloat16)
    tm, mp = _pick_tiles(M, K)
    if mp != M:
        a = jnp.pad(a, ((0, mp - M), (0, 0)))
    out = pl.pallas_call(
        functools.partial(_mm_bias_act_kernel, leaky=leaky),
        out_shape=jax.ShapeDtypeStruct((mp, Np), jnp.float32),
        grid=(mp // tm,),
        in_specs=[
            pl.BlockSpec((tm, K), lambda i: (i, 0)),
            pl.BlockSpec((K, Np), lambda i: (0, 0)),
            pl.BlockSpec((1, Np), lambda i: (0, 0)),
        ],
        out_specs=pl.BlockSpec((tm, Np), lambda i: (i, 0)),
        compiler_params=pltpu.CompilerParams(
            dimension_semantics=("parallel",),
            vmem_limit_bytes=VMEM_LIMIT,
        ),
    )(a, w, b)
    return out[:M, :n_out]


# ----------------------------------------------------------------------------
# Pallas kernel 2: cost-volume correlation (fused /C and LeakyReLU)
# ----------------------------------------------------------------------------
def _corr_kernel(f1_ref, f2_ref, o_ref, *, wdim, disp, inv_c):
    # f1_ref: (1, 1, C, W) bf16   (one output image row)
    # f2_ref: (1, H+2md, C, W+2md) bf16   (whole padded f2 image of this batch)
    # o_ref:  (1, 1, D*D, W) f32
    h = pl.program_id(1)
    f1 = f1_ref[0, 0].astype(jnp.float32)                     # (C, W)
    for dy in range(disp):
        f2row = f2_ref[0, h + dy].astype(jnp.float32)         # (C, W + disp - 1)
        for dx in range(disp):
            prod = f1 * f2row[:, dx:dx + wdim]
            s = jnp.sum(prod, axis=0, keepdims=True) * inv_c  # (1, W)
            s = jnp.where(s >= 0, s, 0.1 * s)                 # fused LeakyReLU
            d = dy * disp + dx
            o_ref[0, 0, d:d + 1, :] = s


@functools.partial(jax.jit, static_argnames=("md",))
def _corr_pallas(f1t, f2t, md):
    # f1t: (B, H, C, W) bf16, f2t: (B, H+2md, C, W+2md) bf16
    B, H, C, W = f1t.shape
    D = 2 * md + 1
    D2 = D * D
    kern = functools.partial(_corr_kernel, wdim=W, disp=D, inv_c=1.0 / C)
    out = pl.pallas_call(
        kern,
        out_shape=jax.ShapeDtypeStruct((B, H, D2, W), jnp.float32),
        grid=(B, H),
        in_specs=[
            pl.BlockSpec((1, 1, C, W), lambda b, h: (b, h, 0, 0)),
            pl.BlockSpec((1, H + 2 * md, C, W + 2 * md), lambda b, h: (b, 0, 0, 0)),
        ],
        out_specs=pl.BlockSpec((1, 1, D2, W), lambda b, h: (b, h, 0, 0)),
        compiler_params=pltpu.CompilerParams(
            dimension_semantics=("parallel", "arbitrary"),
            vmem_limit_bytes=VMEM_LIMIT,
        ),
    )(f1t, f2t)
    return out


def correlation_lrelu(f1, f2, md=4):
    """LeakyReLU(corr(f1, f2) / C) with MMCV-style displacement channels."""
    # TODO(synk): MMCV Correlation displacement-channel ordering assumed dy-major.
    B, C, H, W = f1.shape
    f1t = jnp.transpose(f1, (0, 2, 1, 3)).astype(jnp.bfloat16)      # (B, H, C, W)
    f2p = jnp.pad(f2, ((0, 0), (0, 0), (md, md), (md, md)))
    f2t = jnp.transpose(f2p, (0, 2, 1, 3)).astype(jnp.bfloat16)     # (B, H+2md, C, W+2md)
    out = _corr_pallas(f1t, f2t, md)                                # (B, H, D2, W)
    return jnp.transpose(out, (0, 2, 1, 3))                         # (B, D2, H, W)


# ----------------------------------------------------------------------------
# weight packing (done once at init: layout + bf16 cast hoisted out of hot path)
# ----------------------------------------------------------------------------
def pack_conv(w, b):
    """w: (Cout, Cin, KH, KW), b: (Cout,) -> packed bf16 matmul operands."""
    Cout, Cin, KH, KW = w.shape
    K = Cin * KH * KW
    Np = _round_up(Cout, 128)
    wm = w.reshape(Cout, K).T.astype(jnp.bfloat16)
    wmp = jnp.zeros((K, Np), jnp.bfloat16).at[:, :Cout].set(wm)
    bp = jnp.zeros((1, Np), jnp.float32).at[0, :Cout].set(b)
    return {"wmat": wmp, "b": bp, "cout": Cout, "cin": Cin, "k": KH}


# phase tap tables for ConvTranspose2d(k=4, s=2, p=1):
#   output parity r/s -> [(offset into 1-padded input, kernel index), ...]
_DECONV_TAPS = {0: [(0, 3), (1, 1)], 1: [(1, 2), (2, 0)]}


def pack_deconv(w, b):
    """w: (Cin, Cout, 4, 4) ConvTranspose2d weight -> 4 phase matmuls."""
    Cin, Cout, _, _ = w.shape
    Np = _round_up(Cout, 128)
    phases = {}
    for r in (0, 1):
        for s in (0, 1):
            taps, wrows = [], []
            for (ro, ky) in _DECONV_TAPS[r]:
                for (co, kx) in _DECONV_TAPS[s]:
                    taps.append((ro, co))
                    wrows.append(w[:, :, ky, kx])                 # (Cin, Cout)
            wstk = jnp.stack(wrows, axis=1).reshape(Cin * 4, Cout)
            wmp = (jnp.zeros((Cin * 4, Np), jnp.bfloat16)
                   .at[:, :Cout].set(wstk.astype(jnp.bfloat16)))
            phases[(r, s)] = {"wmat": wmp, "taps": taps}
    bp = jnp.zeros((1, Np), jnp.float32).at[0, :Cout].set(b)
    return {"phases": phases, "b": bp, "cout": Cout, "cin": Cin}


# ----------------------------------------------------------------------------
# conv / deconv / deform-conv wrappers (im2col glue -> Pallas matmul)
# ----------------------------------------------------------------------------
def conv2d(x, cp, stride=1, padding=1, dilation=1, leaky=True):
    B, Cin, H, W = x.shape
    k, Cout = cp["k"], cp["cout"]
    OH = (H + 2 * padding - dilation * (k - 1) - 1) // stride + 1
    OW = (W + 2 * padding - dilation * (k - 1) - 1) // stride + 1
    xh = x.transpose(0, 2, 3, 1).astype(jnp.bfloat16)           # NHWC bf16
    xp = jnp.pad(xh, ((0, 0), (padding, padding), (padding, padding), (0, 0)))
    taps = []
    for i in range(k):
        for j in range(k):
            ys, xs = i * dilation, j * dilation
            taps.append(xp[:, ys:ys + (OH - 1) * stride + 1:stride,
                           xs:xs + (OW - 1) * stride + 1:stride, :])
    col = jnp.stack(taps, axis=-1).reshape(B * OH * OW, Cin * k * k)
    out = _matmul_bias_act(col, cp["wmat"], cp["b"], leaky, Cout)
    return out.reshape(B, OH, OW, Cout).transpose(0, 3, 1, 2)


def deconv2d(x, dp, leaky=True):
    """ConvTranspose2d(k=4, s=2, p=1) as 4 output-phase 2x2 sub-convolutions."""
    B, Cin, H, W = x.shape
    Cout = dp["cout"]
    xh = x.transpose(0, 2, 3, 1).astype(jnp.bfloat16)
    xp = jnp.pad(xh, ((0, 0), (1, 1), (1, 1), (0, 0)))
    phase = {}
    for (r, s), ph in dp["phases"].items():
        taps = [xp[:, ro:ro + H, co:co + W, :] for (ro, co) in ph["taps"]]
        col = jnp.stack(taps, axis=-1).reshape(B * H * W, Cin * 4)
        o = _matmul_bias_act(col, ph["wmat"], dp["b"], leaky, Cout)
        phase[(r, s)] = o.reshape(B, H, W, Cout)
    top = jnp.stack([phase[(0, 0)], phase[(0, 1)]], axis=3)      # (B,H,W,2,C)
    bot = jnp.stack([phase[(1, 0)], phase[(1, 1)]], axis=3)
    y = jnp.stack([top, bot], axis=2)                            # (B,H,2,W,2,C)
    return y.reshape(B, 2 * H, 2 * W, Cout).transpose(0, 3, 1, 2)


def deform_conv2d(x, off, dp):
    """torchvision DeformConv2d(k=3, s=1, p=1) where all 9 taps share one
    (dy, dx) offset (the flow).  off: (B, 2, H, W)."""
    # TODO(synk): DeformConv2d offset channel interleave assumed (dy, dx) per tap.
    B, Cin, H, W = x.shape
    Cout = dp["cout"]
    off_y, off_x = off[:, 0], off[:, 1]                          # (B, H, W)
    yy = jnp.arange(H, dtype=jnp.float32)[None, :, None]
    xx = jnp.arange(W, dtype=jnp.float32)[None, None, :]
    py = yy + off_y
    px = xx + off_x
    y0 = jnp.floor(py)
    x0 = jnp.floor(px)
    wy = (py - y0)[..., None]
    wx = (px - x0)[..., None]
    xh = x.transpose(0, 2, 3, 1)                                 # (B, H, W, Cin)
    flat = xh.reshape(B, H * W, Cin)

    # 16 gathers on the shared 4x4 integer neighborhood (instead of 9*4=36).
    g = {}
    for a in range(4):
        for bb in range(4):
            yi = y0 + (a - 1.0)
            xi = x0 + (bb - 1.0)
            valid = (yi >= 0) & (yi <= H - 1) & (xi >= 0) & (xi <= W - 1)
            yc = jnp.clip(yi, 0, H - 1).astype(jnp.int32)
            xc = jnp.clip(xi, 0, W - 1).astype(jnp.int32)
            idx = (yc * W + xc).reshape(B, H * W, 1)
            gg = jnp.take_along_axis(flat, jnp.broadcast_to(idx, (B, H * W, Cin)),
                                     axis=1)
            g[(a, bb)] = gg.reshape(B, H, W, Cin) * valid[..., None].astype(x.dtype)

    w00 = (1 - wy) * (1 - wx)
    w01 = (1 - wy) * wx
    w10 = wy * (1 - wx)
    w11 = wy * wx
    samples = []
    for i in range(3):
        for j in range(3):
            s = (g[(i, j)] * w00 + g[(i, j + 1)] * w01 +
                 g[(i + 1, j)] * w10 + g[(i + 1, j + 1)] * w11)
            samples.append(s.astype(jnp.bfloat16))
    col = jnp.stack(samples, axis=-1).reshape(B * H * W, Cin * 9)
    out = _matmul_bias_act(col, dp["wmat"], dp["b"], False, Cout)
    return out.reshape(B, H, W, Cout).transpose(0, 3, 1, 2)


# ----------------------------------------------------------------------------
# upsample / interpolate / centralize glue (plain JAX)
# ----------------------------------------------------------------------------
def upsample(img, factor):
    """Fixed-kernel conv_transpose upsampling from the reference code."""
    if factor == 1:
        return img
    B, C, H, W = img.shape
    x = img.reshape(B * C, 1, H, W)
    x = jnp.pad(x, ((0, 0), (0, 0), (0, 1), (0, 1)), mode="edge")
    w = factor * 2 - 1
    c = w // 2
    k1 = 1.0 - jnp.abs(c - jnp.arange(w, dtype=jnp.float32)) / (c + 1)
    kernel = (k1[None, :] * k1[:, None]).reshape(1, 1, w, w)
    up = lax.conv_general_dilated(
        x, kernel, window_strides=(1, 1),
        padding=((factor - 1, factor - 1), (factor - 1, factor - 1)),
        lhs_dilation=(factor, factor),
        dimension_numbers=("NCHW", "OIHW", "NCHW"))
    up = up[:, :, :-1, :-1]
    _, _, H2, W2 = up.shape
    return up.reshape(B, C, H2, W2)


def interp_bilinear(img, out_h, out_w):
    """F.interpolate(..., mode='bilinear', align_corners=False)."""
    B, C, H, W = img.shape
    ys = jnp.maximum((jnp.arange(out_h, dtype=jnp.float32) + 0.5) * (H / out_h) - 0.5, 0.0)
    xs = jnp.maximum((jnp.arange(out_w, dtype=jnp.float32) + 0.5) * (W / out_w) - 0.5, 0.0)
    y0 = jnp.floor(ys).astype(jnp.int32)
    x0 = jnp.floor(xs).astype(jnp.int32)
    y1 = jnp.minimum(y0 + 1, H - 1)
    x1 = jnp.minimum(x0 + 1, W - 1)
    wy = (ys - y0)[None, None, :, None]
    wx = (xs - x0)[None, None, None, :]
    Ia = img[:, :, y0][:, :, :, x0]
    Ib = img[:, :, y0][:, :, :, x1]
    Ic = img[:, :, y1][:, :, :, x0]
    Id = img[:, :, y1][:, :, :, x1]
    return Ia * (1 - wy) * (1 - wx) + Ib * (1 - wy) * wx + Ic * wy * (1 - wx) + Id * wy * wx


def centralize(img1, img2):
    B = img1.shape[0]
    both = jnp.concatenate((img1, img2), axis=2)
    mean = both.reshape(B, 3, -1).mean(axis=2).reshape(B, 3, 1, 1)
    return img1 - mean, img2 - mean, mean


# ----------------------------------------------------------------------------
# parameter initialization (deterministic, synthetic) + packing
# ----------------------------------------------------------------------------
def init_params(key):
    P = {}
    idx = [0]

    def nk():
        k = jax.random.fold_in(key, idx[0])
        idx[0] += 1
        return k

    def conv_w(cin, cout, k=3):
        std = math.sqrt(2.0 / (cin * k * k))            # kaiming_normal fan_in
        return (jax.random.normal(nk(), (cout, cin, k, k), jnp.float32) * std,
                jnp.zeros((cout,), jnp.float32))

    def deconv_w(cin, cout, k=4):
        std = math.sqrt(2.0 / (cout * k * k))
        return (jax.random.normal(nk(), (cin, cout, k, k), jnp.float32) * std,
                jnp.zeros((cout,), jnp.float32))

    def dconv_w(cin, cout, k=3):
        bound = 1.0 / math.sqrt(cin * k * k)
        return (jax.random.uniform(nk(), (cout, cin, k, k), jnp.float32, -bound, bound),
                jax.random.uniform(nk(), (cout,), jnp.float32, -bound, bound))

    enc = [("conv1a", 3, 16), ("conv1b", 16, 16), ("conv1c", 16, 16),
           ("conv2a", 16, 32), ("conv2b", 32, 32), ("conv2c", 32, 32),
           ("conv3a", 32, 64), ("conv3b", 64, 64), ("conv3c", 64, 64),
           ("conv4a", 64, 96), ("conv4b", 96, 96), ("conv4c", 96, 96),
           ("conv5a", 96, 128), ("conv5b", 128, 128), ("conv5c", 128, 128),
           ("conv6a", 128, 196), ("conv6b", 196, 196), ("conv6c", 196, 196)]
    for n, ci, co in enc:
        P[n] = pack_conv(*conv_w(ci, co))

    nd = 81
    dd = [128, 256, 352, 416, 448]
    level_od = {6: nd, 5: nd + 128 + 18, 4: nd + 96 + 18, 3: nd + 64 + 18, 2: nd + 32 + 18}
    out_chs = [128, 128, 96, 64, 32]
    for lvl in (6, 5, 4, 3, 2):
        od = level_od[lvl]
        ins = [od, od + dd[0], od + dd[1], od + dd[2], od + dd[3]]
        for k in range(5):
            P[f"conv{lvl}_{k}"] = pack_conv(*conv_w(ins[k], out_chs[k]))
        wf, bf = conv_w(od + dd[4], 2)
        if lvl > 2:
            wm, bm = conv_w(od + dd[4], 1)
            # fused pred_flow + pred_mask (one matmul, 3 output channels)
            P[f"pred_fm{lvl}"] = pack_conv(jnp.concatenate([wf, wm], axis=0),
                                           jnp.concatenate([bf, bm], axis=0))
            P[f"upfeat{lvl - 1}"] = pack_deconv(*deconv_w(od + dd[4], 16))
        else:
            P["pred_flow2"] = pack_conv(wf, bf)

    for lvl, ch in ((5, 128), (4, 96), (3, 64), (2, 32)):
        P[f"deform{lvl}"] = pack_conv(*dconv_w(ch, ch))
        P[f"conv{lvl}f"] = pack_conv(*conv_w(16, ch))

    dcio = [(579, 128), (128, 128), (128, 128), (128, 96), (96, 64), (64, 32), (32, 2)]
    for i, (ci, co) in enumerate(dcio, 1):
        P[f"dc_conv{i}"] = pack_conv(*conv_w(ci, co))
    return P


# ----------------------------------------------------------------------------
# MaskFlownet_S process / forward
# ----------------------------------------------------------------------------
SCALE = 20.0
STRIDES = [64, 32, 16, 8, 4]


def process(P, im1, im2):
    def encode(im):
        c1 = conv2d(conv2d(conv2d(im, P["conv1a"], stride=2), P["conv1b"]), P["conv1c"])
        c2 = conv2d(conv2d(conv2d(c1, P["conv2a"], stride=2), P["conv2b"]), P["conv2c"])
        c3 = conv2d(conv2d(conv2d(c2, P["conv3a"], stride=2), P["conv3b"]), P["conv3c"])
        c4 = conv2d(conv2d(conv2d(c3, P["conv4a"], stride=2), P["conv4b"]), P["conv4c"])
        c5 = conv2d(conv2d(conv2d(c4, P["conv5a"], stride=2), P["conv5b"]), P["conv5c"])
        c6 = conv2d(conv2d(conv2d(c5, P["conv6a"], stride=2), P["conv6b"]), P["conv6c"])
        return {1: c1, 2: c2, 3: c3, 4: c4, 5: c5, 6: c6}

    f1 = encode(im1)
    f2 = encode(im2)

    # level 6
    corr6 = correlation_lrelu(f1[6], f2[6])
    x = jnp.concatenate((conv2d(corr6, P["conv6_0"]), corr6), axis=1)
    for k in range(1, 5):
        x = jnp.concatenate((conv2d(x, P[f"conv6_{k}"]), x), axis=1)
    fm = conv2d(x, P["pred_fm6"], leaky=False)
    flow, mask = fm[:, 0:2], fm[:, 2:3]
    flows = {6: flow}

    # levels 5..2
    for lvl, sidx in ((5, 1), (4, 2), (3, 3), (2, 4)):
        feat = deconv2d(x, P[f"upfeat{lvl}"], leaky=True)       # LeakyReLU fused
        flow = upsample(flow, 2)
        mask = upsample(mask, 2)
        warp_off = flow * SCALE / STRIDES[sidx]
        warp = deform_conv2d(f2[lvl], warp_off, P[f"deform{lvl}"])
        warp = lrelu(warp * jax.nn.sigmoid(mask) + conv2d(feat, P[f"conv{lvl}f"], leaky=False))
        corr_l = correlation_lrelu(f1[lvl], warp)
        x = jnp.concatenate((corr_l, f1[lvl], feat, flow), axis=1)
        for k in range(5):
            x = jnp.concatenate((conv2d(x, P[f"conv{lvl}_{k}"]), x), axis=1)
        if lvl > 2:
            fm = conv2d(x, P[f"pred_fm{lvl}"], leaky=False)
            flow = flow + fm[:, 0:2]
            mask = fm[:, 2:3]
        else:
            flow = flow + conv2d(x, P["pred_flow2"], leaky=False)
        flows[lvl] = flow

    # context (dilated) network
    y = conv2d(x, P["dc_conv1"])
    y = conv2d(y, P["dc_conv2"], padding=2, dilation=2)
    y = conv2d(y, P["dc_conv3"], padding=4, dilation=4)
    y = conv2d(y, P["dc_conv4"], padding=8, dilation=8)
    z = conv2d(y, P["dc_conv5"], padding=16, dilation=16)
    z = conv2d(z, P["dc_conv6"])
    flows[2] = flows[2] + conv2d(z, P["dc_conv7"], leaky=False)

    # NOTE: occlusion masks / warped srcs in the reference `process` are dead
    # code for `forward` (only `predictions` is consumed), so they are skipped.
    predictions = [jnp.flip(flows[l], axis=1) * SCALE for l in (6, 5, 4, 3, 2)]
    return predictions


def maskflownet_forward(P, ref, sup):
    assert ref.shape == sup.shape
    ref, sup, _ = centralize(ref, sup)
    h, w = ref.shape[2], ref.shape[3]
    w_floor = math.floor(math.ceil(w / 64.0) * 64.0)
    h_floor = math.floor(math.ceil(h / 64.0) * 64.0)
    ref_r = interp_bilinear(ref, h_floor, w_floor)
    sup_r = interp_bilinear(sup, h_floor, w_floor)
    preds = process(P, ref_r, sup_r)
    flow = upsample(preds[-1], 4)
    flow = interp_bilinear(flow, h, w)
    scale_vec = jnp.array([w / w_floor, h / h_floor], jnp.float32).reshape(1, 2, 1, 1)
    return flow * scale_vec


# ----------------------------------------------------------------------------
# demo
# ----------------------------------------------------------------------------
if __name__ == "__main__":
    key = jax.random.PRNGKey(0)
    params = init_params(key)
    k1, k2 = jax.random.split(jax.random.fold_in(key, 12345))
    ref = jax.random.uniform(k1, (1, 3, 64, 64), jnp.float32)
    sup = jax.random.uniform(k2, (1, 3, 64, 64), jnp.float32)

    flow = maskflownet_forward(params, ref, sup)
    flow = jax.block_until_ready(flow)
    assert flow.shape == (1, 2, 64, 64)
    assert bool(jnp.all(jnp.isfinite(flow)))
    print("KERNEL_OK")
</pallas_src>

<mosaic_0001>
module attributes {stable_mosaic.version = 11 : i64} {
  func.func @_mm_bias_act_kernel(%arg0: i32, %arg1: memref<512x27xbf16, #tpu.memory_space<vmem>>, %arg2: memref<27x128xbf16, #tpu.memory_space<vmem>>, %arg3: memref<1x128xf32, #tpu.memory_space<vmem>>, %arg4: memref<512x128xf32, #tpu.memory_space<vmem>>) attributes {dimension_semantics = [#tpu.dimension_semantics<parallel>], iteration_bounds = array<i64: 2>, scalar_prefetch = 0 : i64, scratch_operands = 0 : i64, tpu.core_type = #tpu.core_type<tc>, window_params = [{transform_indices = @transform_0, window_bounds = array<i64: 512, 27>}, {pipeline_mode = #tpu.pipeline_mode<synchronous>, transform_indices = @transform_1, window_bounds = array<i64: 27, 128>}, {pipeline_mode = #tpu.pipeline_mode<synchronous>, transform_indices = @transform_2, window_bounds = array<i64: 1, 128>}, {transform_indices = @transform_3, window_bounds = array<i64: 512, 128>}]} {
    %c0 = arith.constant 0 : index
    %c0_0 = arith.constant 0 : index
    %0 = vector.load %arg1[%c0, %c0_0] : memref<512x27xbf16, #tpu.memory_space<vmem>>, vector<512x27xbf16>
    %c0_1 = arith.constant 0 : index
    %c0_2 = arith.constant 0 : index
    %1 = vector.load %arg2[%c0_1, %c0_2] : memref<27x128xbf16, #tpu.memory_space<vmem>>, vector<27x128xbf16>
    %cst = arith.constant dense<0.000000e+00> : vector<512x128xf32>
    %2 = tpu.matmul %0, %1, %cst {dimension_numbers = #tpu.dot_dimension_numbers<[1], [0], [0], [1], [0, 0, 1, 1], [], []>} : vector<512x27xbf16>, vector<27x128xbf16>, vector<512x128xf32> -> vector<512x128xf32>
    %c0_3 = arith.constant 0 : index
    %c0_4 = arith.constant 0 : index
    %3 = vector.load %arg3[%c0_3, %c0_4] : memref<1x128xf32, #tpu.memory_space<vmem>>, vector<1x128xf32>
    %4 = vector.broadcast %3 : vector<1x128xf32> to vector<512x128xf32>
    %5 = arith.addf %2, %4 : vector<512x128xf32>
    %cst_5 = arith.constant 0.000000e+00 : f32
    %6 = vector.broadcast %cst_5 : f32 to vector<512x128xf32>
    %7 = arith.cmpf oge, %5, %6 : vector<512x128xf32>
    %cst_6 = arith.constant 1.000000e-01 : f32
    %8 = vector.broadcast %cst_6 : f32 to vector<512x128xf32>
    %9 = arith.mulf %8, %5 : vector<512x128xf32>
    %10 = arith.select %7, %5, %9 : vector<512x128xi1>, vector<512x128xf32>
    %c0_7 = arith.constant 0 : index
    %c0_8 = arith.constant 0 : index
    %11 = vector.load %arg4[%c0_7, %c0_8] : memref<512x128xf32, #tpu.memory_space<vmem>>, vector<512x128xf32>
    tpu.vector_store %arg4[%c0_7, %c0_8], %10 {strides = array<i32>} : memref<512x128xf32, #tpu.memory_space<vmem>>, vector<512x128xf32>,
    return
  }
  func.func @transform_0(%arg0: i32) -> (i32, i32) {
    %c0_i32 = arith.constant 0 : i32
    %c0_i32_0 = arith.constant 0 : i32
    return %arg0, %c0_i32 : i32, i32
  }
  func.func @transform_1(%arg0: i32) -> (i32, i32) {
    %c0_i32 = arith.constant 0 : i32
    %c0_i32_0 = arith.constant 0 : i32
    %c0_i32_1 = arith.constant 0 : i32
    return %c0_i32, %c0_i32_0 : i32, i32
  }
  func.func @transform_2(%arg0: i32) -> (i32, i32) {
    %c0_i32 = arith.constant 0 : i32
    %c0_i32_0 = arith.constant 0 : i32
    %c0_i32_1 = arith.constant 0 : i32
    return %c0_i32, %c0_i32_0 : i32, i32
  }
  func.func @transform_3(%arg0: i32) -> (i32, i32) {
    %c0_i32 = arith.constant 0 : i32
    %c0_i32_0 = arith.constant 0 : i32
    return %arg0, %c0_i32 : i32, i32
  }
}

</mosaic_0001>

<llo_original>
// kernel: _matmul_bias_act.1
$region0: #{_matmul_bias_act.1}
  #allocation0 [shape = 'u32[]', space=smem, size = 0x4, offset = 0x4, fixed_abs, tag = 'smem constant byte address 0x4 - core index']
  #allocation1 [shape = 'u32[144,128]{1,0:T(1,128)}', space=vmem, size = 0x12000, scoped, tag = 'internal scratch']
  %s0 = inlined_call_operand.vmem [shape: bf16[1024,27], index: 0, kind: input, shape index: {}]
  %s1 = inlined_call_operand.vmem [shape: bf16[27,128], index: 1, kind: input, shape index: {}]
  %s2 = inlined_call_operand.vmem [shape: f32[1,128], index: 2, kind: input, shape index: {}]
  %s3 = inlined_call_operand.vmem [shape: f32[1024,128], index: 3, kind: output, shape index: {}]
  %s4 = sld [smem:[#allocation0]]
  $region45: #{_matmul_bias_act.1} parent=0
    _
  %s6 = ssub.s32 1, %s4
  %s7 = scalar_select 0, %s6, %s4
  loop: start=0, step=1, limit=4
  $region2: #{_matmul_bias_act.1} parent=0 // loop_pre_header
    _
  $region3: #{_matmul_bias_act.1} parent=0 // loop_header
    %s9 = sphi 0, %s13
    %p10 = scmp.ge.s32.totalorder %s9, 4
    %s19 = sphi 0, %s21
    %s22 = sphi 0, %s19
    %s23 = sphi 0, %s22
    %s39 = sphi 0, %s23
    %s43 = sphi 0, %s43
    %s45 = sphi 0, %s43
    %s46 = sphi 0, %s45
    %s60 = sphi 0, %s46
    %s64 = sphi 0, %s64
    %s66 = sphi 0, %s64
    %s67 = sphi 0, %s66
    %s81 = sphi 0, %s67
    %s87 = sphi 0, %s89
    %s90 = sphi 0, %s87
    %s91 = sphi 0, %s90
    %s107 = sphi 0, %s91
  $region4: #{_matmul_bias_act.1} parent=0 // loop_header_branch
    %12 = sbr.rel (%p10) target = $region8
  $region5: #{_matmul_bias_act.1} parent=0 // loop_body
    %s14 = ssub.s32 %s9, 1
    %s15 = ssub.s32 %s9, 2
    %s16 = sadd.s32 %s9, 1
    %s17 = ssub.s32 %s9, %s16
    %p18 = scmp.eq.s32.totalorder %s17, 0
    %s20 = sadd.s32 %s19, 1
    %s21 = scalar_select %p18, %s19, %s20
    %p24 = pneg %p18
    %p25 = scmp.eq.s32.totalorder %s9, 1
    %p26 = por %p24, %p25
    %p27 = scmp.ne.s32.totalorder %s19, %s22
    %p28 = scmp.eq.s32.totalorder %s9, 0
    %p29 = por %p27, %p28
    %p30 = scmp.ne.s32.totalorder %s19, %s22
    %p31 = scmp.eq.s32.totalorder %s14, 1
    %p32 = por %p30, %p31
    %p33 = scmp.ne.s32.totalorder %s22, %s23
    %p34 = scmp.eq.s32.totalorder %s14, 0
    %p35 = por %p33, %p34
    %p36 = scmp.ne.s32.totalorder %s22, %s23
    %p37 = scmp.eq.s32.totalorder %s15, 1
    %p38 = por %p36, %p37
    %p40 = scmp.ne.s32.totalorder %s23, %s39
    %p41 = scmp.eq.s32.totalorder %s15, 0
    %p42 = por %p40, %p41
    %s44 = sadd.s32 %s43, 1
    %p47 = scmp.eq.s32.totalorder %s9, 1
    %p48 = scmp.ne.s32.totalorder %s43, %s45
    %p49 = scmp.eq.s32.totalorder %s9, 0
    %p50 = por %p48, %p49
    %p51 = scmp.ne.s32.totalorder %s43, %s45
    %p52 = scmp.eq.s32.totalorder %s14, 1
    %p53 = por %p51, %p52
    %p54 = scmp.ne.s32.totalorder %s45, %s46
    %p55 = scmp.eq.s32.totalorder %s14, 0
    %p56 = por %p54, %p55
    %p57 = scmp.ne.s32.totalorder %s45, %s46
    %p58 = scmp.eq.s32.totalorder %s15, 1
    %p59 = por %p57, %p58
    %p61 = scmp.ne.s32.totalorder %s46, %s60
    %p62 = scmp.eq.s32.totalorder %s15, 0
    %p63 = por %p61, %p62
    %s65 = sadd.s32 %s64, 1
    %p68 = scmp.eq.s32.totalorder %s9, 1
    %p69 = scmp.ne.s32.totalorder %s64, %s66
    %p70 = scmp.eq.s32.totalorder %s9, 0
    %p71 = por %p69, %p70
    %p72 = scmp.ne.s32.totalorder %s64, %s66
    %p73 = scmp.eq.s32.totalorder %s14, 1
    %p74 = por %p72, %p73
    %p75 = scmp.ne.s32.totalorder %s66, %s67
    %p76 = scmp.eq.s32.totalorder %s14, 0
    %p77 = por %p75, %p76
    %p78 = scmp.ne.s32.totalorder %s66, %s67
    %p79 = scmp.eq.s32.totalorder %s15, 1
    %p80 = por %p78, %p79
    %p82 = scmp.ne.s32.totalorder %s67, %s81
    %p83 = scmp.eq.s32.totalorder %s15, 0
    %p84 = por %p82, %p83
    %s85 = ssub.s32 %s9, %s16
    %p86 = scmp.eq.s32.totalorder %s85, 0
    %s88 = sadd.s32 %s87, 1
    %s89 = scalar_select %p86, %s87, %s88
    %p92 = pneg %p86
    %p93 = scmp.eq.s32.totalorder %s9, 1
    %p94 = por %p92, %p93
    %p95 = scmp.ne.s32.totalorder %s87, %s90
    %p96 = scmp.eq.s32.totalorder %s9, 0
    %p97 = por %p95, %p96
    %p98 = scmp.ne.s32.totalorder %s87, %s90
    %p99 = scmp.eq.s32.totalorder %s14, 1
    %p100 = por %p98, %p99
    %p101 = scmp.ne.s32.totalorder %s90, %s91
    %p102 = scmp.eq.s32.totalorder %s14, 0
    %p103 = por %p101, %p102
    %p104 = scmp.ne.s32.totalorder %s90, %s91
    %p105 = scmp.eq.s32.totalorder %s15, 1
    %p106 = por %p104, %p105
    %p108 = scmp.ne.s32.totalorder %s91, %s107
    %p109 = scmp.eq.s32.totalorder %s15, 0
    %p110 = por %p108, %p109
    %p111 = scmp.le.s32.totalorder 1, %s9
    %p112 = scmp.lt.s32.totalorder %s9, 3
    %p113 = pnand %p111, %p112
    %p114 = pneg %p113
    // Predicated region
    $region9: #{_matmul_bias_act.1} parent=5 // pred_check
      _
    $region10: #{_matmul_bias_act.1} parent=5 // pred_check_branch
      %116 = sbr.rel (%p113) target = $region12
    $region11: #{_matmul_bias_act.1} parent=5 // pred_region
      %s117 = ssub.s32 %s9, 1
      // Predicated region
      $region13: #{_matmul_bias_act.1} parent=11 // pred_check
        %p118 = pneg %p56
      $region14: #{_matmul_bias_act.1} parent=11 // pred_check_branch
        %120 = sbr.rel (%p118) target = $region16
      $region15: #{_matmul_bias_act.1} parent=11 // pred_region
        _
      $region16: #{_matmul_bias_act.1} parent=11 // pred_fallthru
        _
      // Predicated region
      $region17: #{_matmul_bias_act.1} parent=11 // pred_check
        %p121 = pneg %p77
      $region18: #{_matmul_bias_act.1} parent=11 // pred_check_branch
        %123 = sbr.rel (%p121) target = $region20
      $region19: #{_matmul_bias_act.1} parent=11 // pred_region
        _
      $region20: #{_matmul_bias_act.1} parent=11 // pred_fallthru
        _
    $region12: #{_matmul_bias_act.1} parent=5 // pred_fallthru
      _
    %p124 = scmp.lt.s32.totalorder %s9, 2
    // Predicated region
    $region21: #{_matmul_bias_act.1} parent=5 // pred_check
      %p125 = pneg %p124
    $region22: #{_matmul_bias_act.1} parent=5 // pred_check_branch
      %127 = sbr.rel (%p125) target = $region24
    $region23: #{_matmul_bias_act.1} parent=5 // pred_region
      // Predicated region
      $region25: #{_matmul_bias_act.1} parent=23 // pred_check
        %p128 = pneg %p29
      $region26: #{_matmul_bias_act.1} parent=23 // pred_check_branch
        %130 = sbr.rel (%p128) target = $region28
      $region27: #{_matmul_bias_act.1} parent=23 // pred_region
        %s131 = smul.u32 64, %s9
        %p132 = scmp.lt.s32.totalorder %s131, 127
        %s133 = scalar_select %p132, %s131, 127
        %s134 = smul.addr %s133, 4
        %s135 = scalar_lea.vmem %s0, %s134
        %s136 = smul.u32 64, %s9
      $region28: #{_matmul_bias_act.1} parent=23 // pred_fallthru
        _
    $region24: #{_matmul_bias_act.1} parent=5 // pred_fallthru
      _
    %p137 = scmp.le.s32.totalorder 1, %s9
    %p138 = scmp.lt.s32.totalorder %s9, 3
    %p139 = pnand %p137, %p138
    %p140 = pneg %p139
    // Predicated region
    $region29: #{_matmul_bias_act.1} parent=5 // pred_check
      _
    $region30: #{_matmul_bias_act.1} parent=5 // pred_check_branch
      %142 = sbr.rel (%p139) target = $region32
    $region31: #{_matmul_bias_act.1} parent=5 // pred_region
      %s143 = ssub.s32 %s9, 1
      %s144 = smul.u32 64, %s14
      %p145 = scmp.lt.s32.totalorder %s144, 127
      %s146 = scalar_select %p145, %s144, 127
      %s147 = smul.addr %s146, 4
      %s148 = scalar_lea.vmem %s0, %s147
      %p149 = pneg %p35
      %p150 = pneg %p32
      %p151 = pneg %p56
      %p152 = pneg %p53
      %p153 = pneg %p77
      %p154 = pneg %p74
      %p155 = pneg %p103
      %p156 = pneg %p100
      %s157 = smul.u32 64, %s14
      %p158 = scmp.lt.s32.totalorder %s157, 127
      %s159 = scalar_select %p158, %s157, 127
      %s160 = smul.addr %s159, 8
      %s161 = scalar_lea.vmem %s3, %s160
      %s162 = smul.u32 64, %s14
      %p163 = scmp.lt.s32.totalorder %s162, 127
      %s164 = scalar_select %p163, %s162, 127
      %s165 = smul.addr %s164, 4
      %s166 = scalar_lea.vmem %s0, %s165
      %s167 = smul.u32 64, %s14
      %s168 = smul.u32 64, %s14
      %p169 = scmp.lt.s32.totalorder %s168, 127
      %s170 = scalar_select %p169, %s168, 127
      %s171 = smul.addr %s170, 8
      %s172 = scalar_lea.vmem %s3, %s171
      %s173 = smul.u32 64, %s14
      %v175 = vld [vmem:[%s166] sm:$0xf]
      %v176 = vld [vmem:[%s166 + $0x4] sm:$0xf]
      %v177 = vld [vmem:[%s166 + $0x8] sm:$0xf]
      %v178 = vld [vmem:[%s166 + $0xc] sm:$0xf]
      %v179 = vld [vmem:[%s166 + $0x10] sm:$0xf]
      %v180 = vld [vmem:[%s166 + $0x14] sm:$0xf]
      %v181 = vld [vmem:[%s166 + $0x18] sm:$0xf]
      %v182 = vld [vmem:[%s166 + $0x1c] sm:$0xf]
      %v183 = vld [vmem:[%s166 + $0x20] sm:$0xf]
      %v184 = vld [vmem:[%s166 + $0x24] sm:$0xf]
      %v185 = vld [vmem:[%s166 + $0x28] sm:$0xf]
      %v186 = vld [vmem:[%s166 + $0x2c] sm:$0xf]
      %v187 = vld [vmem:[%s166 + $0x30] sm:$0xf]
      %v188 = vld [vmem:[%s166 + $0x34] sm:$0xf]
      %v189 = vld [vmem:[%s166 + $0x38] sm:$0xf]
      %v190 = vld [vmem:[%s166 + $0x3c] sm:$0xf]
      %v191 = vld [vmem:[%s166 + $0x40] sm:$0xf]
      %v192 = vld [vmem:[%s166 + $0x44] sm:$0xf]
      %v193 = vld [vmem:[%s166 + $0x48] sm:$0xf]
      %v194 = vld [vmem:[%s166 + $0x4c] sm:$0xf]
      %v195 = vld [vmem:[%s166 + $0x50] sm:$0xf]
      %v196 = vld [vmem:[%s166 + $0x54] sm:$0xf]
      %v197 = vld [vmem:[%s166 + $0x58] sm:$0xf]
      %v198 = vld [vmem:[%s166 + $0x5c] sm:$0xf]
      %v199 = vld [vmem:[%s166 + $0x60] sm:$0xf]
      %v200 = vld [vmem:[%s166 + $0x64] sm:$0xf]
      %v201 = vld [vmem:[%s166 + $0x68] sm:$0xf]
      %v202 = vld [vmem:[%s166 + $0x6c] sm:$0xf]
      %v203 = vld [vmem:[%s166 + $0x70] sm:$0xf]
      %v204 = vld [vmem:[%s166 + $0x74] sm:$0xf]
      %v205 = vld [vmem:[%s166 + $0x78] sm:$0xf]
      %v206 = vld [vmem:[%s166 + $0x7c] sm:$0xf]
      %v207 = vld [vmem:[%s166 + $0x80] sm:$0xf]
      %v208 = vld [vmem:[%s166 + $0x84] sm:$0xf]
      %v209 = vld [vmem:[%s166 + $0x88] sm:$0xf]
      %v210 = vld [vmem:[%s166 + $0x8c] sm:$0xf]
      %v211 = vld [vmem:[%s166 + $0x90] sm:$0xf]
      %v212 = vld [vmem:[%s166 + $0x94] sm:$0xf]
      %v213 = vld [vmem:[%s166 + $0x98] sm:$0xf]
      %v214 = vld [vmem:[%s166 + $0x9c] sm:$0xf]
      %v215 = vld [vmem:[%s166 + $0xa0] sm:$0xf]
      %v216 = vld [vmem:[%s166 + $0xa4] sm:$0xf]
      %v217 = vld [vmem:[%s166 + $0xa8] sm:$0xf]
      %v218 = vld [vmem:[%s166 + $0xac] sm:$0xf]
      %v219 = vld [vmem:[%s166 + $0xb0] sm:$0xf]
      %v220 = vld [vmem:[%s166 + $0xb4] sm:$0xf]
      %v221 = vld [vmem:[%s166 + $0xb8] sm:$0xf]
      %v222 = vld [vmem:[%s166 + $0xbc] sm:$0xf]
      %v223 = vld [vmem:[%s166 + $0xc0] sm:$0xf]
      %v224 = vld [vmem:[%s166 + $0xc4] sm:$0xf]
      %v225 = vld [vmem:[%s166 + $0xc8] sm:$0xf]
      %v226 = vld [vmem:[%s166 + $0xcc] sm:$0xf]
      %v227 = vld [vmem:[%s166 + $0xd0] sm:$0xf]
      %v228 = vld [vmem:[%s166 + $0xd4] sm:$0xf]
      %v229 = vld [vmem:[%s166 + $0xd8] sm:$0xf]
      %v230 = vld [vmem:[%s166 + $0xdc] sm:$0xf]
      %v231 = vld [vmem:[%s166 + $0xe0] sm:$0xf]
      %v232 = vld [vmem:[%s166 + $0xe4] sm:$0xf]
      %v233 = vld [vmem:[%s166 + $0xe8] sm:$0xf]
      %v234 = vld [vmem:[%s166 + $0xec] sm:$0xf]
      %v235 = vld [vmem:[%s166 + $0xf0] sm:$0xf]
      %v236 = vld [vmem:[%s166 + $0xf4] sm:$0xf]
      %v237 = vld [vmem:[%s166 + $0xf8] sm:$0xf]
      %v238 = vld [vmem:[%s166 + $0xfc] sm:$0xf]
      %v239 = vld [vmem:[%s1] sm:$0xf]
      %v240 = vld [vmem:[%s1 + $0x4] sm:$0xf]
      %v241 = vld [vmem:[%s1 + $0x8] sm:$0xf]
      %v242 = vld [vmem:[%s1 + $0xc] sm:$0x3]
      %v243 = vld [vmem:[%s2] sm:$0x1]
      %v245 = vlaneseq
      %v246 = vshrl.u32 %v245, 7
      %v247 = vsub.s32 0, %v246
      %v248 = vrot.slane %v243, %v247
      %v314 = vunpack.c.l.b16 %v175
      %v315 = vunpack.c.l.b16 %v176
      %v316 = vunpack.c.l.b16 %v177
      %v317 = vunpack.c.l.b16 %v178
      %v318 = vunpack.c.l.b16 %v179
      %v319 = vunpack.c.l.b16 %v180
      %v320 = vunpack.c.l.b16 %v181
      %v321 = vunpack.c.l.b16 %v182
      %v322 = vunpack.c.l.b16 %v183
      %v323 = vunpack.c.l.b16 %v184
      %v324 = vunpack.c.l.b16 %v185
      %v325 = vunpack.c.l.b16 %v186
      %v326 = vunpack.c.l.b16 %v187
      %v327 = vunpack.c.l.b16 %v188
      %v328 = vunpack.c.l.b16 %v189
      %v329 = vunpack.c.l.b16 %v190
      %v330 = vunpack.c.l.b16 %v191
      %v331 = vunpack.c.l.b16 %v192
      %v332 = vunpack.c.l.b16 %v193
      %v333 = vunpack.c.l.b16 %v194
      %v334 = vunpack.c.l.b16 %v195
      %v335 = vunpack.c.l.b16 %v196
      %v336 = vunpack.c.l.b16 %v197
      %v337 = vunpack.c.l.b16 %v198
      %v338 = vunpack.c.l.b16 %v199
      %v339 = vunpack.c.l.b16 %v200
      %v340 = vunpack.c.l.b16 %v201
      %v341 = vunpack.c.l.b16 %v202
      %v342 = vunpack.c.l.b16 %v203
      %v343 = vunpack.c.l.b16 %v204
      %v344 = vunpack.c.l.b16 %v205
      %v345 = vunpack.c.l.b16 %v206
      %v346 = vunpack.c.l.b16 %v207
      %v347 = vunpack.c.l.b16 %v208
      %v348 = vunpack.c.l.b16 %v209
      %v349 = vunpack.c.l.b16 %v210
      %v350 = vunpack.c.l.b16 %v211
      %v351 = vunpack.c.l.b16 %v212
      %v352 = vunpack.c.l.b16 %v213
      %v353 = vunpack.c.l.b16 %v214
      %v354 = vunpack.c.l.b16 %v215
      %v355 = vunpack.c.l.b16 %v216
      %v356 = vunpack.c.l.b16 %v217
      %v357 = vunpack.c.l.b16 %v218
      %v358 = vunpack.c.l.b16 %v219
      %v359 = vunpack.c.l.b16 %v220
      %v360 = vunpack.c.l.b16 %v221
      %v361 = vunpack.c.l.b16 %v222
      %v362 = vunpack.c.l.b16 %v223
      %v363 = vunpack.c.l.b16 %v224
      %v364 = vunpack.c.l.b16 %v225
      %v365 = vunpack.c.l.b16 %v226
      %v366 = vunpack.c.l.b16 %v227
      %v367 = vunpack.c.l.b16 %v228
      %v368 = vunpack.c.l.b16 %v229
      %v369 = vunpack.c.l.b16 %v230
      %v370 = vunpack.c.l.b16 %v231
      %v371 = vunpack.c.l.b16 %v232
      %v372 = vunpack.c.l.b16 %v233
      %v373 = vunpack.c.l.b16 %v234
      %v374 = vunpack.c.l.b16 %v235
      %v375 = vunpack.c.l.b16 %v236
      %v376 = vunpack.c.l.b16 %v237
      %v377 = vunpack.c.l.b16 %v238
      %v378 = vpack.c.b16 %v315, %v314
      %v379 = vpack.c.b16 %v317, %v316
      %v380 = vpack.c.b16 %v319, %v318
      %v381 = vpack.c.b16 %v321, %v320
      %v382 = vpack.c.b16 %v323, %v322
      %v383 = vpack.c.b16 %v325, %v324
      %v384 = vpack.c.b16 %v327, %v326
      %v385 = vpack.c.b16 %v329, %v328
      %v386 = vpack.c.b16 %v331, %v330
      %v387 = vpack.c.b16 %v333, %v332
      %v388 = vpack.c.b16 %v335, %v334
      %v389 = vpack.c.b16 %v337, %v336
      %v390 = vpack.c.b16 %v339, %v338
      %v391 = vpack.c.b16 %v341, %v340
      %v392 = vpack.c.b16 %v343, %v342
      %v393 = vpack.c.b16 %v345, %v344
      %v394 = vpack.c.b16 %v347, %v346
      %v395 = vpack.c.b16 %v349, %v348
      %v396 = vpack.c.b16 %v351, %v350
      %v397 = vpack.c.b16 %v353, %v352
      %v398 = vpack.c.b16 %v355, %v354
      %v399 = vpack.c.b16 %v357, %v356
      %v400 = vpack.c.b16 %v359, %v358
      %v401 = vpack.c.b16 %v361, %v360
      %v402 = vpack.c.b16 %v363, %v362
      %v403 = vpack.c.b16 %v365, %v364
      %v404 = vpack.c.b16 %v367, %v366
      %v405 = vpack.c.b16 %v369, %v368
      %v406 = vpack.c.b16 %v371, %v370
      %v407 = vpack.c.b16 %v373, %v372
      %v408 = vpack.c.b16 %v375, %v374
      %v409 = vpack.c.b16 %v377, %v376
      %v414 = vunpack.c.l.b16 %v239
      %v415 = vunpack.c.l.b16 %v240
      %v416 = vunpack.c.l.b16 %v241
      %v417 = vunpack.c.l.b16 %v242
      %v418 = vpack.c.b16 %v415, %v414
      %v419 = vpack.c.b16 %v417, %v416
      %vm421 = vcmask 220160
      %v423 = vsel %vm421, %v378, 0
      %v426 = vsel %vm421, %v379, 0
      %v429 = vsel %vm421, %v380, 0
      %v432 = vsel %vm421, %v381, 0
      %v435 = vsel %vm421, %v382, 0
      %v438 = vsel %vm421, %v383, 0
      %v441 = vsel %vm421, %v384, 0
      %v444 = vsel %vm421, %v385, 0
      %v447 = vsel %vm421, %v386, 0
      %v450 = vsel %vm421, %v387, 0
      %v453 = vsel %vm421, %v388, 0
      %v456 = vsel %vm421, %v389, 0
      %v459 = vsel %vm421, %v390, 0
      %v462 = vsel %vm421, %v391, 0
      %v465 = vsel %vm421, %v392, 0
      %v468 = vsel %vm421, %v393, 0
      %v471 = vsel %vm421, %v394, 0
      %v474 = vsel %vm421, %v395, 0
      %v477 = vsel %vm421, %v396, 0
      %v480 = vsel %vm421, %v397, 0
      %v483 = vsel %vm421, %v398, 0
      %v486 = vsel %vm421, %v399, 0
      %v489 = vsel %vm421, %v400, 0
      %v492 = vsel %vm421, %v401, 0
      %v495 = vsel %vm421, %v402, 0
      %v498 = vsel %vm421, %v403, 0
      %v501 = vsel %vm421, %v404, 0
      %v504 = vsel %vm421, %v405, 0
      %v507 = vsel %vm421, %v406, 0
      %v510 = vsel %vm421, %v407, 0
      %v513 = vsel %vm421, %v408, 0
      %v516 = vsel %vm421, %v409, 0
      %vm518 = vcmask 1044480
      %vm519 = vcmask 1045504
      %v520 = vsel %vm518, 4294967295, 65535
      %v521 = vsel %vm519, %v520, 0
      %v523 = vand.u32 %v419, %v521
      %525 = vmatprep.subr.bf16.mxu0 0
      %526 = vmatpush1.bf16.msra.mxu0 %v418
      %527 = vmatprep.subr.bf16.mxu0 0
      %528 = vmatpush1.bf16.msra.mxu0 %v523
      %529 = vmatprep.subr.bf16.mxu0 0
      %530 = vmatpush1.bf16.msra.mxu0 0
      %531 = vmatprep.subr.bf16.mxu0 0
      %532 = vmatpush1.bf16.msra.mxu0 0
      %533 = vmatprep.subr.bf16.mxu0 0
      %534 = vmatpush1.bf16.msra.mxu0 0
      %535 = vmatprep.subr.bf16.mxu0 0
      %536 = vmatpush1.bf16.msra.mxu0 0
      %537 = vmatprep.subr.bf16.mxu0 0
      %538 = vmatpush1.bf16.msra.mxu0 0
      %539 = vmatprep.subr.bf16.mxu0 0
      %540 = vmatpush1.bf16.msra.mxu0 0
      %541 = vmatprep.subr.bf16.mxu0 0
      %542 = vmatpush1.bf16.msra.mxu0 0
      %543 = vmatprep.subr.bf16.mxu0 0
      %544 = vmatpush1.bf16.msra.mxu0 0
      %545 = vmatprep.subr.bf16.mxu0 0
      %546 = vmatpush1.bf16.msra.mxu0 0
      %547 = vmatprep.subr.bf16.mxu0 0
      %548 = vmatpush1.bf16.msra.mxu0 0
      %549 = vmatprep.subr.bf16.mxu0 0
      %550 = vmatpush1.bf16.msra.mxu0 0
      %551 = vmatprep.subr.bf16.mxu0 0
      %552 = vmatpush1.bf16.msra.mxu0 0
      %553 = vmatprep.subr.bf16.mxu0 0
      %554 = vmatpush1.bf16.msra.mxu0 0
      %555 = vmatprep.subr.bf16.mxu0 0
      %556 = vmatpush1.bf16.msra.mxu0 0
      %557 = vmatprep.mubr.bf16.mxu0 0
      %558 = vmatmul.mubr.bf16.gmra.mrb[0].mxu0 %v423
      %v559 = vpop.f32.mrb[0].mxu0
      %v560 = vadd.f32 %v248, %v559
      %v561 = vpop.f32.mrb[0].mxu0
      %v562 = vpop.f32.mrb[0].mxu0
      %v563 = vadd.f32 %v248, %v562
      %v564 = vpop.f32.mrb[0].mxu0
      %565 = vmatprep.mubr.bf16.mxu0 0
      %566 = vmatmul.mubr.bf16.gmra.mrb[0].mxu0 %v426
      %v567 = vpop.f32.mrb[0].mxu0
      %v568 = vadd.f32 %v248, %v567
      %v569 = vpop.f32.mrb[0].mxu0
      %v570 = vpop.f32.mrb[0].mxu0
      %v571 = vadd.f32 %v248, %v570
      %v572 = vpop.f32.mrb[0].mxu0
      %573 = vmatprep.mubr.bf16.mxu0 0
      %574 = vmatmul.mubr.bf16.gmra.mrb[0].mxu0 %v429
      %v575 = vpop.f32.mrb[0].mxu0
      %v576 = vadd.f32 %v248, %v575
      %v577 = vpop.f32.mrb[0].mxu0
      %v578 = vpop.f32.mrb[0].mxu0
      %v579 = vadd.f32 %v248, %v578
      %v580 = vpop.f32.mrb[0].mxu0
      %581 = vmatprep.mubr.bf16.mxu0 0
      %582 = vmatmul.mubr.bf16.gmra.mrb[0].mxu0 %v432
      %v583 = vpop.f32.mrb[0].mxu0
      %v584 = vadd.f32 %v248, %v583
      %v585 = vpop.f32.mrb[0].mxu0
      %v586 = vpop.f32.mrb[0].mxu0
      %v587 = vadd.f32 %v248, %v586
      %v588 = vpop.f32.mrb[0].mxu0
      %589 = vmatprep.mubr.bf16.mxu0 0
      %590 = vmatmul.mubr.bf16.gmra.mrb[0].mxu0 %v435
      %v591 = vpop.f32.mrb[0].mxu0
      %v592 = vadd.f32 %v248, %v591
      %v593 = vpop.f32.mrb[0].mxu0
      %v594 = vpop.f32.mrb[0].mxu0
      %v595 = vadd.f32 %v248, %v594
      %v596 = vpop.f32.mrb[0].mxu0
      %597 = vmatprep.mubr.bf16.mxu0 0
      %598 = vmatmul.mubr.bf16.gmra.mrb[0].mxu0 %v438
      %v599 = vpop.f32.mrb[0].mxu0
      %v600 = vadd.f32 %v248, %v599
      %v601 = vpop.f32.mrb[0].mxu0
      %v602 = vpop.f32.mrb[0].mxu0
      %v603 = vadd.f32 %v248, %v602
      %v604 = vpop.f32.mrb[0].mxu0
      %605 = vmatprep.mubr.bf16.mxu0 0
      %606 = vmatmul.mubr.bf16.gmra.mrb[0].mxu0 %v441
      %v607 = vpop.f32.mrb[0].mxu0
      %v608 = vadd.f32 %v248, %v607
      %v609 = vpop.f32.mrb[0].mxu0
      %v610 = vpop.f32.mrb[0].mxu0
      %v611 = vadd.f32 %v248, %v610
      %v612 = vpop.f32.mrb[0].mxu0
      %613 = vmatprep.mubr.bf16.mxu0 0
      %614 = vmatmul.mubr.bf16.gmra.mrb[0].mxu0 %v444
      %v615 = vpop.f32.mrb[0].mxu0
      %v616 = vadd.f32 %v248, %v615
      %v617 = vpop.f32.mrb[0].mxu0
      %v618 = vpop.f32.mrb[0].mxu0
      %v619 = vadd.f32 %v248, %v618
      %v620 = vpop.f32.mrb[0].mxu0
      %621 = vmatprep.mubr.bf16.mxu0 0
      %622 = vmatmul.mubr.bf16.gmra.mrb[0].mxu0 %v447
      %v623 = vpop.f32.mrb[0].mxu0
      %v624 = vadd.f32 %v248, %v623
      %v625 = vpop.f32.mrb[0].mxu0
      %v626 = vpop.f32.mrb[0].mxu0
      %v627 = vadd.f32 %v248, %v626
      %v628 = vpop.f32.mrb[0].mxu0
      %629 = vmatprep.mubr.bf16.mxu0 0
      %630 = vmatmul.mubr.bf16.gmra.mrb[0].mxu0 %v450
      %v631 = vpop.f32.mrb[0].mxu0
      %v632 = vadd.f32 %v248, %v631
      %v633 = vpop.f32.mrb[0].mxu0
      %v634 = vpop.f32.mrb[0].mxu0
      %v635 = vadd.f32 %v248, %v634
      %v636 = vpop.f32.mrb[0].mxu0
      %637 = vmatprep.mubr.bf16.mxu0 0
      %638 = vmatmul.mubr.bf16.gmra.mrb[0].mxu0 %v453
      %v639 = vpop.f32.mrb[0].mxu0
      %v640 = vadd.f32 %v248, %v639
      %v641 = vpop.f32.mrb[0].mxu0
      %v642 = vpop.f32.mrb[0].mxu0
      %v643 = vadd.f32 %v248, %v642
      %v644 = vpop.f32.mrb[0].mxu0
      %645 = vmatprep.mubr.bf16.mxu0 0
      %646 = vmatmul.mubr.bf16.gmra.mrb[0].mxu0 %v456
      %v647 = vpop.f32.mrb[0].mxu0
      %v648 = vadd.f32 %v248, %v647
      %v649 = vpop.f32.mrb[0].mxu0
      %v650 = vpop.f32.mrb[0].mxu0
      %v651 = vadd.f32 %v248, %v650
      %v652 = vpop.f32.mrb[0].mxu0
      %653 = vmatprep.mubr.bf16.mxu0 0
      %654 = vmatmul.mubr.bf16.gmra.mrb[0].mxu0 %v459
      %v655 = vpop.f32.mrb[0].mxu0
      %v656 = vadd.f32 %v248, %v655
      %v657 = vpop.f32.mrb[0].mxu0
      %v658 = vpop.f32.mrb[0].mxu0
      %v659 = vadd.f32 %v248, %v658
      %v660 = vpop.f32.mrb[0].mxu0
      %661 = vmatprep.mubr.bf16.mxu0 0
      %662 = vmatmul.mubr.bf16.gmra.mrb[0].mxu0 %v462
      %v663 = vpop.f32.mrb[0].mxu0
      %v664 = vadd.f32 %v248, %v663
      %v665 = vpop.f32.mrb[0].mxu0
      %v666 = vpop.f32.mrb[0].mxu0
      %v667 = vadd.f32 %v248, %v666
      %v668 = vpop.f32.mrb[0].mxu0
      %669 = vmatprep.mubr.bf16.mxu0 0
      %670 = vmatmul.mubr.bf16.gmra.mrb[0].mxu0 %v465
      %v671 = vpop.f32.mrb[0].mxu0
      %v672 = vadd.f32 %v248, %v671
      %v673 = vpop.f32.mrb[0].mxu0
      %v674 = vpop.f32.mrb[0].mxu0
      %v675 = vadd.f32 %v248, %v674
      %v676 = vpop.f32.mrb[0].mxu0
      %677 = vmatprep.mubr.bf16.mxu0 0
      %678 = vmatmul.mubr.bf16.gmra.mrb[0].mxu0 %v468
      %v679 = vpop.f32.mrb[0].mxu0
      %v680 = vadd.f32 %v248, %v679
      %v681 = vpop.f32.mrb[0].mxu0
      %v682 = vpop.f32.mrb[0].mxu0
      %v683 = vadd.f32 %v248, %v682
      %v684 = vpop.f32.mrb[0].mxu0
      %685 = vmatprep.mubr.bf16.mxu0 0
      %686 = vmatmul.mubr.bf16.gmra.mrb[0].mxu0 %v471
      %v687 = vpop.f32.mrb[0].mxu0
      %v688 = vadd.f32 %v248, %v687
      %v689 = vpop.f32.mrb[0].mxu0
      %v690 = vpop.f32.mrb[0].mxu0
      %v691 = vadd.f32 %v248, %v690
      %v692 = vpop.f32.mrb[0].mxu0
      %693 = vmatprep.mubr.bf16.mxu0 0
      %694 = vmatmul.mubr.bf16.gmra.mrb[0].mxu0 %v474
      %v695 = vpop.f32.mrb[0].mxu0
      %v696 = vadd.f32 %v248, %v695
      %v697 = vpop.f32.mrb[0].mxu0
      %v698 = vpop.f32.mrb[0].mxu0
      %v699 = vadd.f32 %v248, %v698
      %v700 = vpop.f32.mrb[0].mxu0
      %701 = vmatprep.mubr.bf16.mxu0 0
      %702 = vmatmul.mubr.bf16.gmra.mrb[0].mxu0 %v477
      %v703 = vpop.f32.mrb[0].mxu0
      %v704 = vadd.f32 %v248, %v703
      %v705 = vpop.f32.mrb[0].mxu0
      %v706 = vpop.f32.mrb[0].mxu0
      %v707 = vadd.f32 %v248, %v706
      %v708 = vpop.f32.mrb[0].mxu0
      %709 = vmatprep.mubr.bf16.mxu0 0
      %710 = vmatmul.mubr.bf16.gmra.mrb[0].mxu0 %v480
      %v711 = vpop.f32.mrb[0].mxu0
      %v712 = vadd.f32 %v248, %v711
      %v713 = vpop.f32.mrb[0].mxu0
      %v714 = vpop.f32.mrb[0].mxu0
      %v715 = vadd.f32 %v248, %v714
      %v716 = vpop.f32.mrb[0].mxu0
      %717 = vmatprep.mubr.bf16.mxu0 0
      %718 = vmatmul.mubr.bf16.gmra.mrb[0].mxu0 %v483
      %v719 = vpop.f32.mrb[0].mxu0
      %v720 = vadd.f32 %v248, %v719
      %v721 = vpop.f32.mrb[0].mxu0
      %v722 = vpop.f32.mrb[0].mxu0
      %v723 = vadd.f32 %v248, %v722
      %v724 = vpop.f32.mrb[0].mxu0
      %725 = vmatprep.mubr.bf16.mxu0 0
      %726 = vmatmul.mubr.bf16.gmra.mrb[0].mxu0 %v486
      %v727 = vpop.f32.mrb[0].mxu0
      %v728 = vadd.f32 %v248, %v727
      %v729 = vpop.f32.mrb[0].mxu0
      %v730 = vpop.f32.mrb[0].mxu0
      %v731 = vadd.f32 %v248, %v730
      %v732 = vpop.f32.mrb[0].mxu0
      %733 = vmatprep.mubr.bf16.mxu0 0
      %734 = vmatmul.mubr.bf16.gmra.mrb[0].mxu0 %v489
      %v735 = vpop.f32.mrb[0].mxu0
      %v736 = vadd.f32 %v248, %v735
      %v737 = vpop.f32.mrb[0].mxu0
      %v738 = vpop.f32.mrb[0].mxu0
      %v739 = vadd.f32 %v248, %v738
      %v740 = vpop.f32.mrb[0].mxu0
      %741 = vmatprep.mubr.bf16.mxu0 0
      %742 = vmatmul.mubr.bf16.gmra.mrb[0].mxu0 %v492
      %v743 = vpop.f32.mrb[0].mxu0
      %v744 = vadd.f32 %v248, %v743
      %v745 = vpop.f32.mrb[0].mxu0
      %v746 = vpop.f32.mrb[0].mxu0
      %v747 = vadd.f32 %v248, %v746
      %v748 = vpop.f32.mrb[0].mxu0
      %749 = vmatprep.mubr.bf16.mxu0 0
      %750 = vmatmul.mubr.bf16.gmra.mrb[0].mxu0 %v495
      %v751 = vpop.f32.mrb[0].mxu0
      %v752 = vadd.f32 %v248, %v751
      %v753 = vpop.f32.mrb[0].mxu0
      %v754 = vpop.f32.mrb[0].mxu0
      %v755 = vadd.f32 %v248, %v754
      %v756 = vpop.f32.mrb[0].mxu0
      %757 = vmatprep.mubr.bf16.mxu0 0
      %758 = vmatmul.mubr.bf16.gmra.mrb[0].mxu0 %v498
      %v759 = vpop.f32.mrb[0].mxu0
      %v760 = vadd.f32 %v248, %v759
      %v761 = vpop.f32.mrb[0].mxu0
      %v762 = vpop.f32.mrb[0].mxu0
      %v763 = vadd.f32 %v248, %v762
      %v764 = vpop.f32.mrb[0].mxu0
      %765 = vmatprep.mubr.bf16.mxu0 0
      %766 = vmatmul.mubr.bf16.gmra.mrb[0].mxu0 %v501
      %v767 = vpop.f32.mrb[0].mxu0
      %v768 = vadd.f32 %v248, %v767
      %v769 = vpop.f32.mrb[0].mxu0
      %v770 = vpop.f32.mrb[0].mxu0
      %v771 = vadd.f32 %v248, %v770
      %v772 = vpop.f32.mrb[0].mxu0
      %773 = vmatprep.mubr.bf16.mxu0 0
      %774 = vmatmul.mubr.bf16.gmra.mrb[0].mxu0 %v504
      %v775 = vpop.f32.mrb[0].mxu0
      %v776 = vadd.f32 %v248, %v775
      %v777 = vpop.f32.mrb[0].mxu0
      %v778 = vpop.f32.mrb[0].mxu0
      %v779 = vadd.f32 %v248, %v778
      %v780 = vpop.f32.mrb[0].mxu0
      %781 = vmatprep.mubr.bf16.mxu0 0
      %782 = vmatmul.mubr.bf16.gmra.mrb[0].mxu0 %v507
      %v783 = vpop.f32.mrb[0].mxu0
      %v784 = vadd.f32 %v248, %v783
      %v785 = vpop.f32.mrb[0].mxu0
      %v786 = vpop.f32.mrb[0].mxu0
      %v787 = vadd.f32 %v248, %v786
      %v788 = vpop.f32.mrb[0].mxu0
      %789 = vmatprep.mubr.bf16.mxu0 0
      %790 = vmatmul.mubr.bf16.gmra.mrb[0].mxu0 %v510
      %v791 = vpop.f32.mrb[0].mxu0
      %v792 = vadd.f32 %v248, %v791
      %v793 = vpop.f32.mrb[0].mxu0
      %v794 = vpop.f32.mrb[0].mxu0
      %v795 = vadd.f32 %v248, %v794
      %v796 = vpop.f32.mrb[0].mxu0
      %797 = vmatprep.mubr.bf16.mxu0 0
      %798 = vmatmul.mubr.bf16.gmra.mrb[0].mxu0 %v513
      %v799 = vpop.f32.mrb[0].mxu0
      %v800 = vadd.f32 %v248, %v799
      %v801 = vpop.f32.mrb[0].mxu0
      %v802 = vpop.f32.mrb[0].mxu0
      %v803 = vadd.f32 %v248, %v802
      %v804 = vpop.f32.mrb[0].mxu0
      %805 = vmatprep.mubr.bf16.mxu0 0
      %806 = vmatmul.mubr.bf16.gmra.mrb[0].mxu0 %v516
      %v807 = vpop.f32.mrb[0].mxu0
      %v808 = vadd.f32 %v248, %v807
      %v809 = vpop.f32.mrb[0].mxu0
      %v810 = vpop.f32.mrb[0].mxu0
      %v811 = vadd.f32 %v248, %v810
      %v812 = vpop.f32.mrb[0].mxu0
      %813 = vdwg.mxu0
      %vm814 = vcmp.ge.f32.partialorder %v560, 0.0
      %vm815 = vcmp.ge.f32.partialorder %v563, 0.0
      %vm816 = vcmp.ge.f32.partialorder %v568, 0.0
      %vm817 = vcmp.ge.f32.partialorder %v571, 0.0
      %vm818 = vcmp.ge.f32.partialorder %v576, 0.0
      %vm819 = vcmp.ge.f32.partialorder %v579, 0.0
      %vm820 = vcmp.ge.f32.partialorder %v584, 0.0
      %vm821 = vcmp.ge.f32.partialorder %v587, 0.0
      %vm822 = vcmp.ge.f32.partialorder %v592, 0.0
      %vm823 = vcmp.ge.f32.partialorder %v595, 0.0
      %vm824 = vcmp.ge.f32.partialorder %v600, 0.0
      %vm825 = vcmp.ge.f32.partialorder %v603, 0.0
      %vm826 = vcmp.ge.f32.partialorder %v608, 0.0
      %vm827 = vcmp.ge.f32.partialorder %v611, 0.0
      %vm828 = vcmp.ge.f32.partialorder %v616, 0.0
      %vm829 = vcmp.ge.f32.partialorder %v619, 0.0
      %vm830 = vcmp.ge.f32.partialorder %v624, 0.0
      %vm831 = vcmp.ge.f32.partialorder %v627, 0.0
      %vm832 = vcmp.ge.f32.partialorder %v632, 0.0
      %vm833 = vcmp.ge.f32.partialorder %v635, 0.0
      %vm834 = vcmp.ge.f32.partialorder %v640, 0.0
      %vm835 = vcmp.ge.f32.partialorder %v643, 0.0
      %vm836 = vcmp.ge.f32.partialorder %v648, 0.0
      %vm837 = vcmp.ge.f32.partialorder %v651, 0.0
      %vm838 = vcmp.ge.f32.partialorder %v656, 0.0
      %vm839 = vcmp.ge.f32.partialorder %v659, 0.0
      %vm840 = vcmp.ge.f32.partialorder %v664, 0.0
      %vm841 = vcmp.ge.f32.partialorder %v667, 0.0
      %vm842 = vcmp.ge.f32.partialorder %v672, 0.0
      %vm843 = vcmp.ge.f32.partialorder %v675, 0.0
      %vm844 = vcmp.ge.f32.partialorder %v680, 0.0
      %vm845 = vcmp.ge.f32.partialorder %v683, 0.0
      %vm846 = vcmp.ge.f32.partialorder %v688, 0.0
      %vm847 = vcmp.ge.f32.partialorder %v691, 0.0
      %vm848 = vcmp.ge.f32.partialorder %v696, 0.0
      %vm849 = vcmp.ge.f32.partialorder %v699, 0.0
      %vm850 = vcmp.ge.f32.partialorder %v704, 0.0
      %vm851 = vcmp.ge.f32.partialorder %v707, 0.0
      %vm852 = vcmp.ge.f32.partialorder %v712, 0.0
      %vm853 = vcmp.ge.f32.partialorder %v715, 0.0
      %vm854 = vcmp.ge.f32.partialorder %v720, 0.0
      %vm855 = vcmp.ge.f32.partialorder %v723, 0.0
      %vm856 = vcmp.ge.f32.partialorder %v728, 0.0
      %vm857 = vcmp.ge.f32.partialorder %v731, 0.0
      %vm858 = vcmp.ge.f32.partialorder %v736, 0.0
      %vm859 = vcmp.ge.f32.partialorder %v739, 0.0
      %vm860 = vcmp.ge.f32.partialorder %v744, 0.0
      %vm861 = vcmp.ge.f32.partialorder %v747, 0.0
      %vm862 = vcmp.ge.f32.partialorder %v752, 0.0
      %vm863 = vcmp.ge.f32.partialorder %v755, 0.0
      %vm864 = vcmp.ge.f32.partialorder %v760, 0.0
      %vm865 = vcmp.ge.f32.partialorder %v763, 0.0
      %vm866 = vcmp.ge.f32.partialorder %v768, 0.0
      %vm867 = vcmp.ge.f32.partialorder %v771, 0.0
      %vm868 = vcmp.ge.f32.partialorder %v776, 0.0
      %vm869 = vcmp.ge.f32.partialorder %v779, 0.0
      %vm870 = vcmp.ge.f32.partialorder %v784, 0.0
      %vm871 = vcmp.ge.f32.partialorder %v787, 0.0
      %vm872 = vcmp.ge.f32.partialorder %v792, 0.0
      %vm873 = vcmp.ge.f32.partialorder %v795, 0.0
      %vm874 = vcmp.ge.f32.partialorder %v800, 0.0
      %vm875 = vcmp.ge.f32.partialorder %v803, 0.0
      %vm876 = vcmp.ge.f32.partialorder %v808, 0.0
      %vm877 = vcmp.ge.f32.partialorder %v811, 0.0
      %v878 = vmul.f32 %v560, 0.1
      %v879 = vmul.f32 %v563, 0.1
      %v880 = vmul.f32 %v568, 0.1
      %v881 = vmul.f32 %v571, 0.1
      %v882 = vmul.f32 %v576, 0.1
      %v883 = vmul.f32 %v579, 0.1
      %v884 = vmul.f32 %v584, 0.1
      %v885 = vmul.f32 %v587, 0.1
      %v886 = vmul.f32 %v592, 0.1
      %v887 = vmul.f32 %v595, 0.1
      %v888 = vmul.f32 %v600, 0.1
      %v889 = vmul.f32 %v603, 0.1
      %v890 = vmul.f32 %v608, 0.1
      %v891 = vmul.f32 %v611, 0.1
      %v892 = vmul.f32 %v616, 0.1
      %v893 = vmul.f32 %v619, 0.1
      %v894 = vmul.f32 %v624, 0.1
      %v895 = vmul.f32 %v627, 0.1
      %v896 = vmul.f32 %v632, 0.1
      %v897 = vmul.f32 %v635, 0.1
      %v898 = vmul.f32 %v640, 0.1
      %v899 = vmul.f32 %v643, 0.1
      %v900 = vmul.f32 %v648, 0.1
      %v901 = vmul.f32 %v651, 0.1
      %v902 = vmul.f32 %v656, 0.1
      %v903 = vmul.f32 %v659, 0.1
      %v904 = vmul.f32 %v664, 0.1
      %v905 = vmul.f32 %v667, 0.1
      %v906 = vmul.f32 %v672, 0.1
      %v907 = vmul.f32 %v675, 0.1
      %v908 = vmul.f32 %v680, 0.1
      %v909 = vmul.f32 %v683, 0.1
      %v910 = vmul.f32 %v688, 0.1
      %v911 = vmul.f32 %v691, 0.1
      %v912 = vmul.f32 %v696, 0.1
      %v913 = vmul.f32 %v699, 0.1
      %v914 = vmul.f32 %v704, 0.1
      %v915 = vmul.f32 %v707, 0.1
      %v916 = vmul.f32 %v712, 0.1
      %v917 = vmul.f32 %v715, 0.1
      %v918 = vmul.f32 %v720, 0.1
      %v919 = vmul.f32 %v723, 0.1
      %v920 = vmul.f32 %v728, 0.1
      %v921 = vmul.f32 %v731, 0.1
      %v922 = vmul.f32 %v736, 0.1
      %v923 = vmul.f32 %v739, 0.1
      %v924 = vmul.f32 %v744, 0.1
      %v925 = vmul.f32 %v747, 0.1
      %v926 = vmul.f32 %v752, 0.1
      %v927 = vmul.f32 %v755, 0.1
      %v928 = vmul.f32 %v760, 0.1
      %v929 = vmul.f32 %v763, 0.1
      %v930 = vmul.f32 %v768, 0.1
      %v931 = vmul.f32 %v771, 0.1
      %v932 = vmul.f32 %v776, 0.1
      %v933 = vmul.f32 %v779, 0.1
      %v934 = vmul.f32 %v784, 0.1
      %v935 = vmul.f32 %v787, 0.1
      %v936 = vmul.f32 %v792, 0.1
      %v937 = vmul.f32 %v795, 0.1
      %v938 = vmul.f32 %v800, 0.1
      %v939 = vmul.f32 %v803, 0.1
      %v940 = vmul.f32 %v808, 0.1
      %v941 = vmul.f32 %v811, 0.1
      %v942 = vsel %vm814, %v560, %v878
      %v943 = vsel %vm815, %v563, %v879
      %v944 = vsel %vm816, %v568, %v880
      %v945 = vsel %vm817, %v571, %v881
      %v946 = vsel %vm818, %v576, %v882
      %v947 = vsel %vm819, %v579, %v883
      %v948 = vsel %vm820, %v584, %v884
      %v949 = vsel %vm821, %v587, %v885
      %v950 = vsel %vm822, %v592, %v886
      %v951 = vsel %vm823, %v595, %v887
      %v952 = vsel %vm824, %v600, %v888
      %v953 = vsel %vm825, %v603, %v889
      %v954 = vsel %vm826, %v608, %v890
      %v955 = vsel %vm827, %v611, %v891
      %v956 = vsel %vm828, %v616, %v892
      %v957 = vsel %vm829, %v619, %v893
      %v958 = vsel %vm830, %v624, %v894
      %v959 = vsel %vm831, %v627, %v895
      %v960 = vsel %vm832, %v632, %v896
      %v961 = vsel %vm833, %v635, %v897
      %v962 = vsel %vm834, %v640, %v898
      %v963 = vsel %vm835, %v643, %v899
      %v964 = vsel %vm836, %v648, %v900
      %v965 = vsel %vm837, %v651, %v901
      %v966 = vsel %vm838, %v656, %v902
      %v967 = vsel %vm839, %v659, %v903
      %v968 = vsel %vm840, %v664, %v904
      %v969 = vsel %vm841, %v667, %v905
      %v970 = vsel %vm842, %v672, %v906
      %v971 = vsel %vm843, %v675, %v907
      %v972 = vsel %vm844, %v680, %v908
      %v973 = vsel %vm845, %v683, %v909
      %v974 = vsel %vm846, %v688, %v910
      %v975 = vsel %vm847, %v691, %v911
      %v976 = vsel %vm848, %v696, %v912
      %v977 = vsel %vm849, %v699, %v913
      %v978 = vsel %vm850, %v704, %v914
      %v979 = vsel %vm851, %v707, %v915
      %v980 = vsel %vm852, %v712, %v916
      %v981 = vsel %vm853, %v715, %v917
      %v982 = vsel %vm854, %v720, %v918
      %v983 = vsel %vm855, %v723, %v919
      %v984 = vsel %vm856, %v728, %v920
      %v985 = vsel %vm857, %v731, %v921
      %v986 = vsel %vm858, %v736, %v922
      %v987 = vsel %vm859, %v739, %v923
      %v988 = vsel %vm860, %v744, %v924
      %v989 = vsel %vm861, %v747, %v925
      %v990 = vsel %vm862, %v752, %v926
      %v991 = vsel %vm863, %v755, %v927
      %v992 = vsel %vm864, %v760, %v928
      %v993 = vsel %vm865, %v763, %v929
      %v994 = vsel %vm866, %v768, %v930
      %v995 = vsel %vm867, %v771, %v931
      %v996 = vsel %vm868, %v776, %v932
      %v997 = vsel %vm869, %v779, %v933
      %v998 = vsel %vm870, %v784, %v934
      %v999 = vsel %vm871, %v787, %v935
      %v1000 = vsel %vm872, %v792, %v936
      %v1001 = vsel %vm873, %v795, %v937
      %v1002 = vsel %vm874, %v800, %v938
      %v1003 = vsel %vm875, %v803, %v939
      %v1004 = vsel %vm876, %v808, %v940
      %v1005 = vsel %vm877, %v811, %v941
      %1006 = vst [vmem:[%s172] sm:$0xff] %v942
      %1007 = vst [vmem:[%s172 + $0x8] sm:$0xff] %v943
      %1008 = vst [vmem:[%s172 + $0x10] sm:$0xff] %v944
      %1009 = vst [vmem:[%s172 + $0x18] sm:$0xff] %v945
      %1010 = vst [vmem:[%s172 + $0x20] sm:$0xff] %v946
      %1011 = vst [vmem:[%s172 + $0x28] sm:$0xff] %v947
      %1012 = vst [vmem:[%s172 + $0x30] sm:$0xff] %v948
      %1013 = vst [vmem:[%s172 + $0x38] sm:$0xff] %v949
      %1014 = vst [vmem:[%s172 + $0x40] sm:$0xff] %v950
      %1015 = vst [vmem:[%s172 + $0x48] sm:$0xff] %v951
      %1016 = vst [vmem:[%s172 + $0x50] sm:$0xff] %v952
      %1017 = vst [vmem:[%s172 + $0x58] sm:$0xff] %v953
      %1018 = vst [vmem:[%s172 + $0x60] sm:$0xff] %v954
      %1019 = vst [vmem:[%s172 + $0x68] sm:$0xff] %v955
      %1020 = vst [vmem:[%s172 + $0x70] sm:$0xff] %v956
      %1021 = vst [vmem:[%s172 + $0x78] sm:$0xff] %v957
      %1022 = vst [vmem:[%s172 + $0x80] sm:$0xff] %v958
      %1023 = vst [vmem:[%s172 + $0x88] sm:$0xff] %v959
      %1024 = vst [vmem:[%s172 + $0x90] sm:$0xff] %v960
      %1025 = vst [vmem:[%s172 + $0x98] sm:$0xff] %v961
      %1026 = vst [vmem:[%s172 + $0xa0] sm:$0xff] %v962
      %1027 = vst [vmem:[%s172 + $0xa8] sm:$0xff] %v963
      %1028 = vst [vmem:[%s172 + $0xb0] sm:$0xff] %v964
      %1029 = vst [vmem:[%s172 + $0xb8] sm:$0xff] %v965
      %1030 = vst [vmem:[%s172 + $0xc0] sm:$0xff] %v966
      %1031 = vst [vmem:[%s172 + $0xc8] sm:$0xff] %v967
      %1032 = vst [vmem:[%s172 + $0xd0] sm:$0xff] %v968
      %1033 = vst [vmem:[%s172 + $0xd8] sm:$0xff] %v969
      %1034 = vst [vmem:[%s172 + $0xe0] sm:$0xff] %v970
      %1035 = vst [vmem:[%s172 + $0xe8] sm:$0xff] %v971
      %1036 = vst [vmem:[%s172 + $0xf0] sm:$0xff] %v972
      %1037 = vst [vmem:[%s172 + $0xf8] sm:$0xff] %v973
      %1038 = vst [vmem:[%s172 + $0x100] sm:$0xff] %v974
      %1039 = vst [vmem:[%s172 + $0x108] sm:$0xff] %v975
      %1040 = vst [vmem:[%s172 + $0x110] sm:$0xff] %v976
      %1041 = vst [vmem:[%s172 + $0x118] sm:$0xff] %v977
      %1042 = vst [vmem:[%s172 + $0x120] sm:$0xff] %v978
      %1043 = vst [vmem:[%s172 + $0x128] sm:$0xff] %v979
      %1044 = vst [vmem:[%s172 + $0x130] sm:$0xff] %v980
      %1045 = vst [vmem:[%s172 + $0x138] sm:$0xff] %v981
      %1046 = vst [vmem:[%s172 + $0x140] sm:$0xff] %v982
      %1047 = vst [vmem:[%s172 + $0x148] sm:$0xff] %v983
      %1048 = vst [vmem:[%s172 + $0x150] sm:$0xff] %v984
      %1049 = vst [vmem:[%s172 + $0x158] sm:$0xff] %v985
      %1050 = vst [vmem:[%s172 + $0x160] sm:$0xff] %v986
      %1051 = vst [vmem:[%s172 + $0x168] sm:$0xff] %v987
      %1052 = vst [vmem:[%s172 + $0x170] sm:$0xff] %v988
      %1053 = vst [vmem:[%s172 + $0x178] sm:$0xff] %v989
      %1054 = vst [vmem:[%s172 + $0x180] sm:$0xff] %v990
      %1055 = vst [vmem:[%s172 + $0x188] sm:$0xff] %v991
      %1056 = vst [vmem:[%s172 + $0x190] sm:$0xff] %v992
      %1057 = vst [vmem:[%s172 + $0x198] sm:$0xff] %v993
      %1058 = vst [vmem:[%s172 + $0x1a0] sm:$0xff] %v994
      %1059 = vst [vmem:[%s172 + $0x1a8] sm:$0xff] %v995
      %1060 = vst [vmem:[%s172 + $0x1b0] sm:$0xff] %v996
      %1061 = vst [vmem:[%s172 + $0x1b8] sm:$0xff] %v997
      %1062 = vst [vmem:[%s172 + $0x1c0] sm:$0xff] %v998
      %1063 = vst [vmem:[%s172 + $0x1c8] sm:$0xff] %v999
      %1064 = vst [vmem:[%s172 + $0x1d0] sm:$0xff] %v1000
      %1065 = vst [vmem:[%s172 + $0x1d8] sm:$0xff] %v1001
      %1066 = vst [vmem:[%s172 + $0x1e0] sm:$0xff] %v1002
      %1067 = vst [vmem:[%s172 + $0x1e8] sm:$0xff] %v1003
      %1068 = vst [vmem:[%s172 + $0x1f0] sm:$0xff] %v1004
      %1069 = vst [vmem:[%s172 + $0x1f8] sm:$0xff] %v1005
      %s1070 = smul.u32 64, %s14
      %p1071 = scmp.lt.s32.totalorder %s1070, 127
      %s1072 = scalar_select %p1071, %s1070, 127
      %s1073 = smul.addr %s1072, 8
      %s1074 = scalar_lea.vmem %s3, %s1073
      // Predicated region
      $region33: #{_matmul_bias_act.1} parent=31 // pred_check
        %p1075 = pneg %p100
      $region34: #{_matmul_bias_act.1} parent=31 // pred_check_branch
        %1077 = sbr.rel (%p1075) target = $region36
      $region35: #{_matmul_bias_act.1} parent=31 // pred_region
        %s1078 = smul.u32 64, %s14
      $region36: #{_matmul_bias_act.1} parent=31 // pred_fallthru
        _
    $region32: #{_matmul_bias_act.1} parent=5 // pred_fallthru
      _
    %p1079 = scmp.le.s32.totalorder 2, %s9
    // Predicated region
    $region37: #{_matmul_bias_act.1} parent=5 // pred_check
      %p1080 = pneg %p1079
    $region38: #{_matmul_bias_act.1} parent=5 // pred_check_branch
      %1082 = sbr.rel (%p1080) target = $region40
    $region39: #{_matmul_bias_act.1} parent=5 // pred_region
      %s1083 = ssub.s32 %s9, 2
      // Predicated region
      $region41: #{_matmul_bias_act.1} parent=39 // pred_check
        %p1084 = pneg %p106
      $region42: #{_matmul_bias_act.1} parent=39 // pred_check_branch
        %1086 = sbr.rel (%p1084) target = $region44
      $region43: #{_matmul_bias_act.1} parent=39 // pred_region
        %s1087 = smul.u32 64, %s15
        %p1088 = scmp.lt.s32.totalorder %s1087, 127
        %s1089 = scalar_select %p1088, %s1087, 127
        %s1090 = smul.addr %s1089, 8
        %s1091 = scalar_lea.vmem %s3, %s1090
      $region44: #{_matmul_bias_act.1} parent=39 // pred_fallthru
        _
    $region40: #{_matmul_bias_act.1} parent=5 // pred_fallthru
      _
  $region6: #{_matmul_bias_act.1} parent=0 // loop_footer
    %s13 = sadd.s32 1, %s9
  $region7: #{_matmul_bias_act.1} parent=0 // loop_footer_branch
    %8 = sbr.rel target = $region3
  $region8: #{_matmul_bias_act.1} parent=0 // loop_exit
    _

</llo_original>
